<compile_context>
chip_gen: v7x
topology: tpu7x:2x2x1
jax: 0.10.0
libtpu: 0.0.40
codegen_flags: <defaults>
</compile_context>

<pallas_src>
import jax
import jax.numpy as jnp
from jax.experimental import pallas as pl
from jax.experimental.pallas import tpu as pltpu


def _tap_stack(h):
    """h: (C, NL) value -> (3C, NL) with rows [k*C + c, t] = h[c, t+k].

    Reads past NL are zero-filled; those columns only ever land in the
    per-row garbage zone that the wrapper discards.
    """
    c, nl = h.shape
    taps = [h]
    for k in (1, 2):
        shifted = jnp.concatenate([h[:, k:], jnp.zeros((c, k), h.dtype)], axis=1)
        taps.append(shifted)
    return jnp.concatenate(taps, axis=0)


def fcn01_kernel(x_ref, w1_ref, b1_ref, w2_ref, b2_ref, w3_ref, b3_ref, out_ref):
    # x block: (1, NL, Cin) -> (Cin, NL) with length in the lane dimension.
    x = x_ref[0].astype(jnp.float32)          # (NL, Cin)
    xt = jnp.transpose(x)                     # (Cin, NL)   tiny XLU transpose

    # Layer 1: single fused dot, K = 3*Cin.
    h1 = jnp.maximum(
        jnp.dot(w1_ref[...], _tap_stack(xt), preferred_element_type=jnp.float32)
        + b1_ref[...], 0.0)                   # (48, NL)

    # Layer 2: single fused dot, K = 144.
    h2 = jnp.maximum(
        jnp.dot(w2_ref[...], _tap_stack(h1), preferred_element_type=jnp.float32)
        + b2_ref[...], 0.0)                   # (24, NL)

    # Layer 3 (Cout=1): VPU multiply + cross-sublane reduce, no MXU pass.
    h3 = jnp.sum(_tap_stack(h2) * w3_ref[...], axis=0, keepdims=True) + b3_ref[...]

    out_ref[0] = h3.astype(out_ref.dtype)     # full 128-lane (1, NL) store


def fcn01_forward(x, params, target_lanes=128):
    """x: (B, L, C_in) float32.  Returns PyTorch-equivalent output of FCN_01.forward.

    params: [(w1, b1), (w2, b2), (w3, b3)] with PyTorch Conv1d layout
            w: (Cout, Cin, 3), b: (Cout,).
    """
    (w1, b1), (w2, b2), (w3, b3) = params
    B, L, Cin = x.shape
    Lout = L - 6

    # Pack Bt batch rows per grid step so the lane dimension is >= target_lanes.
    Bt = max(1, min(B, pl.cdiv(target_lanes, L)))
    G = pl.cdiv(B, Bt)
    Bpad = G * Bt
    if Bpad != B:
        x = jnp.pad(x, ((0, Bpad - B), (0, 0), (0, 0)))
    NL = Bt * L
    x_packed = x.reshape(G, NL, Cin)          # contiguous merge -> free reshape

    # Fuse the 3 taps into the weight layout the kernel expects:
    #   w_fused[co, k*Cin + ci] = w[co, ci, k]
    def fuse_w(w):
        co, ci, k = w.shape
        return jnp.transpose(w, (0, 2, 1)).reshape(co, k * ci)

    w1f = fuse_w(w1)                          # (48, 24)
    w2f = fuse_w(w2)                          # (24, 144)
    w3f = fuse_w(w3).reshape(-1, 1)           # (72, 1) column for VPU broadcast
    b1c = b1.reshape(-1, 1)                   # (48, 1)
    b2c = b2.reshape(-1, 1)                   # (24, 1)
    b3c = b3.reshape(1, 1)                    # (1, 1)

    out = pl.pallas_call(
        fcn01_kernel,
        out_shape=jax.ShapeDtypeStruct((G, 1, NL), jnp.float32),
        grid_spec=pltpu.PrefetchScalarGridSpec(
            num_scalar_prefetch=0,
            grid=(G,),
            in_specs=[
                pl.BlockSpec((1, NL, Cin), lambda g: (g, 0, 0)),
                pl.BlockSpec(w1f.shape, lambda g: (0, 0)),
                pl.BlockSpec(b1c.shape, lambda g: (0, 0)),
                pl.BlockSpec(w2f.shape, lambda g: (0, 0)),
                pl.BlockSpec(b2c.shape, lambda g: (0, 0)),
                pl.BlockSpec(w3f.shape, lambda g: (0, 0)),
                pl.BlockSpec(b3c.shape, lambda g: (0, 0)),
            ],
            out_specs=pl.BlockSpec((1, 1, NL), lambda g: (g, 0, 0)),
        ),
        compiler_params=pltpu.CompilerParams(dimension_semantics=("parallel",)),
    )(x_packed, w1f, b1c, w2f, b2c, w3f, b3c)

    # Unpack: (G, 1, NL) -> (Bpad, L) (free reshape), drop per-row garbage
    # columns and batch padding, then restore the channel dim.
    out = out.reshape(Bpad, L)[:B, :Lout]
    out = out[:, None, :]                     # (B, 1, Lout)
    # PyTorch: x.squeeze(0) -- only removes dim 0 if B == 1.
    if B == 1:
        out = jnp.squeeze(out, axis=0)
    return out


def init_params(key, input_size):
    """Deterministic init mimicking PyTorch Conv1d default (U[-1/sqrt(fan_in*K), +]).

    Weights are kept in PyTorch layout (Cout, Cin, 3); the wrapper flattens them.
    """
    dims = [(input_size, 48), (48, 24), (24, 1)]
    params = []
    for i, (cin, cout) in enumerate(dims):
        kw, kb = jax.random.split(jax.random.fold_in(key, i))
        bound = 1.0 / jnp.sqrt(cin * 3.0)
        w = jax.random.uniform(kw, (cout, cin, 3), jnp.float32, -bound, bound)
        b = jax.random.uniform(kb, (cout,), jnp.float32, -bound, bound)
        params.append((w, b))
    return params


def reference_forward(x, params):
    """Pure-jnp reference with identical semantics to FCN_01.forward."""
    h = jnp.transpose(x, (0, 2, 1))           # (B, Cin, L)
    for layer, (w, b) in enumerate(params):
        l_out = h.shape[2] - 2
        acc = sum(
            jnp.einsum("oc,bcl->bol", w[:, :, k], h[:, :, k:k + l_out])
            for k in range(3)
        )
        h = acc + b[None, :, None]
        if layer < 2:
            h = jnp.maximum(h, 0.0)
    if x.shape[0] == 1:
        h = jnp.squeeze(h, axis=0)
    return h


if __name__ == "__main__":
    key = jax.random.PRNGKey(0)
    input_size = 8   # C_in
    B, L = 8, 32     # Bt=4 rows packed per grid step -> 128-lane slabs, G=2 steps

    kx, kp = jax.random.split(key)
    x = jax.random.normal(kx, (B, L, input_size), jnp.float32)
    params = init_params(kp, input_size)

    out = jax.block_until_ready(fcn01_forward(x, params))
    ref = reference_forward(x, params)

    assert out.shape == ref.shape == (B, 1, L - 6), (out.shape, ref.shape)
    assert jnp.allclose(out, ref, atol=2e-5, rtol=2e-5)
    print("KERNEL_OK")
</pallas_src>

<mosaic_0001>
module attributes {stable_mosaic.version = 11 : i64} {
  func.func @fcn01_kernel(%arg0: i32, %arg1: memref<1x128x8xf32, #tpu.memory_space<vmem>>, %arg2: memref<48x24xf32, #tpu.memory_space<vmem>>, %arg3: memref<48x1xf32, #tpu.memory_space<vmem>>, %arg4: memref<24x144xf32, #tpu.memory_space<vmem>>, %arg5: memref<24x1xf32, #tpu.memory_space<vmem>>, %arg6: memref<72x1xf32, #tpu.memory_space<vmem>>, %arg7: memref<1x1xf32, #tpu.memory_space<vmem>>, %arg8: memref<1x1x128xf32, #tpu.memory_space<vmem>>) attributes {dimension_semantics = [#tpu.dimension_semantics<parallel>], iteration_bounds = array<i64: 2>, scalar_prefetch = 0 : i64, scratch_operands = 0 : i64, tpu.core_type = #tpu.core_type<tc>, window_params = [{transform_indices = @transform_0, window_bounds = array<i64: 1, 128, 8>}, {pipeline_mode = #tpu.pipeline_mode<synchronous>, transform_indices = @transform_1, window_bounds = array<i64: 48, 24>}, {pipeline_mode = #tpu.pipeline_mode<synchronous>, transform_indices = @transform_2, window_bounds = array<i64: 48, 1>}, {pipeline_mode = #tpu.pipeline_mode<synchronous>, transform_indices = @transform_3, window_bounds = array<i64: 24, 144>}, {pipeline_mode = #tpu.pipeline_mode<synchronous>, transform_indices = @transform_4, window_bounds = array<i64: 24, 1>}, {pipeline_mode = #tpu.pipeline_mode<synchronous>, transform_indices = @transform_5, window_bounds = array<i64: 72, 1>}, {pipeline_mode = #tpu.pipeline_mode<synchronous>, transform_indices = @transform_6, window_bounds = array<i64: 1, 1>}, {transform_indices = @transform_7, window_bounds = array<i64: 1, 1, 128>}]} {
    %c0 = arith.constant 0 : index
    %c0_0 = arith.constant 0 : index
    %c0_1 = arith.constant 0 : index
    %0 = vector.load %arg1[%c0, %c0_0, %c0_1] : memref<1x128x8xf32, #tpu.memory_space<vmem>>, vector<1x128x8xf32>
    %1 = vector.shape_cast %0 : vector<1x128x8xf32> to vector<128x8xf32>
    %2 = tpu.transpose %1, [1, 0] : vector<128x8xf32> -> vector<8x128xf32>
    %c0_2 = arith.constant 0 : index
    %c0_3 = arith.constant 0 : index
    %3 = vector.load %arg2[%c0_2, %c0_3] : memref<48x24xf32, #tpu.memory_space<vmem>>, vector<48x24xf32>
    %4 = vector.extract_strided_slice %2 {offsets = [0, 1], sizes = [8, 127], strides = [1, 1]} : vector<8x128xf32> to vector<8x127xf32>
    %cst = arith.constant 0.000000e+00 : f32
    %5 = vector.broadcast %cst : f32 to vector<8x1xf32>
    %6 = tpu.concatenate %4, %5 in 1 : vector<8x127xf32>, vector<8x1xf32> -> vector<8x128xf32>
    %7 = vector.extract_strided_slice %2 {offsets = [0, 2], sizes = [8, 126], strides = [1, 1]} : vector<8x128xf32> to vector<8x126xf32>
    %cst_4 = arith.constant 0.000000e+00 : f32
    %8 = vector.broadcast %cst_4 : f32 to vector<8x2xf32>
    %9 = tpu.concatenate %7, %8 in 1 : vector<8x126xf32>, vector<8x2xf32> -> vector<8x128xf32>
    %10 = tpu.concatenate %2, %6, %9 in 0 : vector<8x128xf32>, vector<8x128xf32>, vector<8x128xf32> -> vector<24x128xf32>
    %cst_5 = arith.constant dense<0.000000e+00> : vector<48x128xf32>
    %11 = tpu.matmul %3, %10, %cst_5 {dimension_numbers = #tpu.dot_dimension_numbers<[1], [0], [0], [1], [0, 0, 1, 1], [], []>} : vector<48x24xf32>, vector<24x128xf32>, vector<48x128xf32> -> vector<48x128xf32>
    %c0_6 = arith.constant 0 : index
    %c0_7 = arith.constant 0 : index
    %12 = vector.load %arg3[%c0_6, %c0_7] : memref<48x1xf32, #tpu.memory_space<vmem>>, vector<48x1xf32>
    %13 = vector.broadcast %12 : vector<48x1xf32> to vector<48x128xf32>
    %14 = arith.addf %11, %13 : vector<48x128xf32>
    %cst_8 = arith.constant 0.000000e+00 : f32
    %15 = vector.broadcast %cst_8 : f32 to vector<48x128xf32>
    %16 = arith.maximumf %14, %15 : vector<48x128xf32>
    %c0_9 = arith.constant 0 : index
    %c0_10 = arith.constant 0 : index
    %17 = vector.load %arg4[%c0_9, %c0_10] : memref<24x144xf32, #tpu.memory_space<vmem>>, vector<24x144xf32>
    %18 = vector.extract_strided_slice %16 {offsets = [0, 1], sizes = [48, 127], strides = [1, 1]} : vector<48x128xf32> to vector<48x127xf32>
    %cst_11 = arith.constant 0.000000e+00 : f32
    %19 = vector.broadcast %cst_11 : f32 to vector<48x1xf32>
    %20 = tpu.concatenate %18, %19 in 1 : vector<48x127xf32>, vector<48x1xf32> -> vector<48x128xf32>
    %21 = vector.extract_strided_slice %16 {offsets = [0, 2], sizes = [48, 126], strides = [1, 1]} : vector<48x128xf32> to vector<48x126xf32>
    %cst_12 = arith.constant 0.000000e+00 : f32
    %22 = vector.broadcast %cst_12 : f32 to vector<48x2xf32>
    %23 = tpu.concatenate %21, %22 in 1 : vector<48x126xf32>, vector<48x2xf32> -> vector<48x128xf32>
    %24 = tpu.concatenate %16, %20, %23 in 0 : vector<48x128xf32>, vector<48x128xf32>, vector<48x128xf32> -> vector<144x128xf32>
    %cst_13 = arith.constant dense<0.000000e+00> : vector<24x128xf32>
    %25 = tpu.matmul %17, %24, %cst_13 {dimension_numbers = #tpu.dot_dimension_numbers<[1], [0], [0], [1], [0, 0, 1, 1], [], []>} : vector<24x144xf32>, vector<144x128xf32>, vector<24x128xf32> -> vector<24x128xf32>
    %c0_14 = arith.constant 0 : index
    %c0_15 = arith.constant 0 : index
    %26 = vector.load %arg5[%c0_14, %c0_15] : memref<24x1xf32, #tpu.memory_space<vmem>>, vector<24x1xf32>
    %27 = vector.broadcast %26 : vector<24x1xf32> to vector<24x128xf32>
    %28 = arith.addf %25, %27 : vector<24x128xf32>
    %cst_16 = arith.constant 0.000000e+00 : f32
    %29 = vector.broadcast %cst_16 : f32 to vector<24x128xf32>
    %30 = arith.maximumf %28, %29 : vector<24x128xf32>
    %31 = vector.extract_strided_slice %30 {offsets = [0, 1], sizes = [24, 127], strides = [1, 1]} : vector<24x128xf32> to vector<24x127xf32>
    %cst_17 = arith.constant 0.000000e+00 : f32
    %32 = vector.broadcast %cst_17 : f32 to vector<24x1xf32>
    %33 = tpu.concatenate %31, %32 in 1 : vector<24x127xf32>, vector<24x1xf32> -> vector<24x128xf32>
    %34 = vector.extract_strided_slice %30 {offsets = [0, 2], sizes = [24, 126], strides = [1, 1]} : vector<24x128xf32> to vector<24x126xf32>
    %cst_18 = arith.constant 0.000000e+00 : f32
    %35 = vector.broadcast %cst_18 : f32 to vector<24x2xf32>
    %36 = tpu.concatenate %34, %35 in 1 : vector<24x126xf32>, vector<24x2xf32> -> vector<24x128xf32>
    %37 = tpu.concatenate %30, %33, %36 in 0 : vector<24x128xf32>, vector<24x128xf32>, vector<24x128xf32> -> vector<72x128xf32>
    %c0_19 = arith.constant 0 : index
    %c0_20 = arith.constant 0 : index
    %38 = vector.load %arg6[%c0_19, %c0_20] : memref<72x1xf32, #tpu.memory_space<vmem>>, vector<72x1xf32>
    %39 = vector.broadcast %38 : vector<72x1xf32> to vector<72x128xf32>
    %40 = arith.mulf %37, %39 : vector<72x128xf32>
    %cst_21 = arith.constant dense<0.000000e+00> : vector<128xf32>
    %41 = vector.multi_reduction <add>, %40, %cst_21 [0] : vector<72x128xf32> to vector<128xf32>
    %42 = vector.shape_cast %41 : vector<128xf32> to vector<1x128xf32>
    %c0_22 = arith.constant 0 : index
    %c0_23 = arith.constant 0 : index
    %43 = vector.load %arg7[%c0_22, %c0_23] : memref<1x1xf32, #tpu.memory_space<vmem>>, vector<1x1xf32>
    %44 = vector.broadcast %43 : vector<1x1xf32> to vector<1x128xf32>
    %45 = arith.addf %42, %44 : vector<1x128xf32>
    %c0_24 = arith.constant 0 : index
    %c0_25 = arith.constant 0 : index
    %c0_26 = arith.constant 0 : index
    %46 = vector.load %arg8[%c0_24, %c0_25, %c0_26] : memref<1x1x128xf32, #tpu.memory_space<vmem>>, vector<1x1x128xf32>
    %47 = vector.shape_cast %46 : vector<1x1x128xf32> to vector<1x128xf32>
    %48 = vector.shape_cast %45 : vector<1x128xf32> to vector<1x1x128xf32>
    tpu.vector_store %arg8[%c0_24, %c0_25, %c0_26], %48 {strides = array<i32>} : memref<1x1x128xf32, #tpu.memory_space<vmem>>, vector<1x1x128xf32>,
    return
  }
  func.func @transform_0(%arg0: i32) -> (i32, i32, i32) {
    %c0_i32 = arith.constant 0 : i32
    %c0_i32_0 = arith.constant 0 : i32
    %c0_i32_1 = arith.constant 0 : i32
    return %arg0, %c0_i32, %c0_i32_0 : i32, i32, i32
  }
  func.func @transform_1(%arg0: i32) -> (i32, i32) {
    %c0_i32 = arith.constant 0 : i32
    %c0_i32_0 = arith.constant 0 : i32
    %c0_i32_1 = arith.constant 0 : i32
    return %c0_i32, %c0_i32_0 : i32, i32
  }
  func.func @transform_2(%arg0: i32) -> (i32, i32) {
    %c0_i32 = arith.constant 0 : i32
    %c0_i32_0 = arith.constant 0 : i32
    %c0_i32_1 = arith.constant 0 : i32
    return %c0_i32, %c0_i32_0 : i32, i32
  }
  func.func @transform_3(%arg0: i32) -> (i32, i32) {
    %c0_i32 = arith.constant 0 : i32
    %c0_i32_0 = arith.constant 0 : i32
    %c0_i32_1 = arith.constant 0 : i32
    return %c0_i32, %c0_i32_0 : i32, i32
  }
  func.func @transform_4(%arg0: i32) -> (i32, i32) {
    %c0_i32 = arith.constant 0 : i32
    %c0_i32_0 = arith.constant 0 : i32
    %c0_i32_1 = arith.constant 0 : i32
    return %c0_i32, %c0_i32_0 : i32, i32
  }
  func.func @transform_5(%arg0: i32) -> (i32, i32) {
    %c0_i32 = arith.constant 0 : i32
    %c0_i32_0 = arith.constant 0 : i32
    %c0_i32_1 = arith.constant 0 : i32
    return %c0_i32, %c0_i32_0 : i32, i32
  }
  func.func @transform_6(%arg0: i32) -> (i32, i32) {
    %c0_i32 = arith.constant 0 : i32
    %c0_i32_0 = arith.constant 0 : i32
    %c0_i32_1 = arith.constant 0 : i32
    return %c0_i32, %c0_i32_0 : i32, i32
  }
  func.func @transform_7(%arg0: i32) -> (i32, i32, i32) {
    %c0_i32 = arith.constant 0 : i32
    %c0_i32_0 = arith.constant 0 : i32
    %c0_i32_1 = arith.constant 0 : i32
    return %arg0, %c0_i32, %c0_i32_0 : i32, i32, i32
  }
}

</mosaic_0001>

<llo_original>
// kernel: tpu_custom_call.1
$region0: #{tpu_custom_call.1}
  #allocation0 [shape = 'u32[]', space=smem, size = 0x4, offset = 0x4, fixed_abs, tag = 'smem constant byte address 0x4 - core index']
  #allocation1 [shape = 'u32[144,128]{1,0:T(1,128)}', space=vmem, size = 0x12000, scoped, tag = 'internal scratch']
  #allocation2 [shape = 'f32[1,1]{1,0:T(1,128)S(1)}', space=vmem, size = 0x200, scoped, tag = 'scoped memory for tpu_custom_call.1']
  %s0 = inlined_call_operand.vmem [shape: f32[2,128,8], index: 0, kind: input, shape index: {}]
  %s1 = inlined_call_operand.vmem [shape: f32[48,24], index: 1, kind: input, shape index: {}]
  %s2 = inlined_call_operand.vmem [shape: f32[48,1], index: 2, kind: input, shape index: {}]
  %s3 = inlined_call_operand.vmem [shape: f32[24,144], index: 3, kind: input, shape index: {}]
  %s4 = inlined_call_operand.vmem [shape: f32[24,1], index: 4, kind: input, shape index: {}]
  %s5 = inlined_call_operand.vmem [shape: f32[72,1], index: 5, kind: input, shape index: {}]
  %s6 = inlined_call_operand.<no memory space> [shape: f32[1,1], index: 6, kind: input, shape index: {}]
  %s7 = inlined_call_operand.hbm [shape: f32[2,1,128], index: 7, kind: output, shape index: {}]
  %s8 = sld [smem:[#allocation0]]
  $region61: #{tpu_custom_call.1} parent=0
    _
  %s10 = ssub.s32 1, %s8
  %s11 = scalar_select 0, %s10, %s8
  %v12 = vstv %s6
  %13 = vst [vmem:[#allocation2] sm:$0x1] %v12
  $region1: #{tpu_custom_call.1} parent=0
    #allocation3 [shape = 'u8[1024]{0}', space=vmem, size = 0x400, scoped, tag = 'output window, operand 0']
    #allocation4 [shape = 's32[2]{0}', space=sflag, size = 0x8, scoped, tag = 'scoped memory for tpu_custom_call.1']
    %14 = vsyncpa [#allocation4], 0
    %s15 = scalar_lea.sflag [#allocation4], 1
    %16 = vsyncpa %s15, 0
    loop: start=0, step=1, limit=4
    $region2: #{tpu_custom_call.1} parent=1 // loop_pre_header
      _
    $region3: #{tpu_custom_call.1} parent=1 // loop_header
      %s18 = sphi 0, %s22
      %p19 = scmp.ge.s32.totalorder %s18, 4
      %s28 = sphi 0, %s30
      %s31 = sphi 0, %s28
      %s32 = sphi 0, %s31
      %s48 = sphi 0, %s32
      %s52 = sphi 0, %s52
      %s54 = sphi 0, %s52
      %s55 = sphi 0, %s54
      %s69 = sphi 0, %s55
      %s73 = sphi 0, %s73
      %s75 = sphi 0, %s73
      %s76 = sphi 0, %s75
      %s90 = sphi 0, %s76
      %s94 = sphi 0, %s94
      %s96 = sphi 0, %s94
      %s97 = sphi 0, %s96
      %s111 = sphi 0, %s97
      %s115 = sphi 0, %s115
      %s117 = sphi 0, %s115
      %s118 = sphi 0, %s117
      %s132 = sphi 0, %s118
      %s136 = sphi 0, %s136
      %s138 = sphi 0, %s136
      %s139 = sphi 0, %s138
      %s153 = sphi 0, %s139
      %s157 = sphi 0, %s157
      %s159 = sphi 0, %s157
      %s160 = sphi 0, %s159
      %s174 = sphi 0, %s160
      %s180 = sphi 0, %s182
      %s183 = sphi 0, %s180
      %s184 = sphi 0, %s183
      %s200 = sphi 0, %s184
    $region4: #{tpu_custom_call.1} parent=1 // loop_header_branch
      %21 = sbr.rel (%p19) target = $region8
    $region5: #{tpu_custom_call.1} parent=1 // loop_body
      %s23 = ssub.s32 %s18, 1
      %s24 = ssub.s32 %s18, 2
      %s25 = sadd.s32 %s18, 1
      %s26 = ssub.s32 %s18, %s25
      %p27 = scmp.eq.s32.totalorder %s26, 0
      %s29 = sadd.s32 %s28, 1
      %s30 = scalar_select %p27, %s28, %s29
      %p33 = pneg %p27
      %p34 = scmp.eq.s32.totalorder %s18, 1
      %p35 = por %p33, %p34
      %p36 = scmp.ne.s32.totalorder %s28, %s31
      %p37 = scmp.eq.s32.totalorder %s18, 0
      %p38 = por %p36, %p37
      %p39 = scmp.ne.s32.totalorder %s28, %s31
      %p40 = scmp.eq.s32.totalorder %s23, 1
      %p41 = por %p39, %p40
      %p42 = scmp.ne.s32.totalorder %s31, %s32
      %p43 = scmp.eq.s32.totalorder %s23, 0
      %p44 = por %p42, %p43
      %p45 = scmp.ne.s32.totalorder %s31, %s32
      %p46 = scmp.eq.s32.totalorder %s24, 1
      %p47 = por %p45, %p46
      %p49 = scmp.ne.s32.totalorder %s32, %s48
      %p50 = scmp.eq.s32.totalorder %s24, 0
      %p51 = por %p49, %p50
      %s53 = sadd.s32 %s52, 1
      %p56 = scmp.eq.s32.totalorder %s18, 1
      %p57 = scmp.ne.s32.totalorder %s52, %s54
      %p58 = scmp.eq.s32.totalorder %s18, 0
      %p59 = por %p57, %p58
      %p60 = scmp.ne.s32.totalorder %s52, %s54
      %p61 = scmp.eq.s32.totalorder %s23, 1
      %p62 = por %p60, %p61
      %p63 = scmp.ne.s32.totalorder %s54, %s55
      %p64 = scmp.eq.s32.totalorder %s23, 0
      %p65 = por %p63, %p64
      %p66 = scmp.ne.s32.totalorder %s54, %s55
      %p67 = scmp.eq.s32.totalorder %s24, 1
      %p68 = por %p66, %p67
      %p70 = scmp.ne.s32.totalorder %s55, %s69
      %p71 = scmp.eq.s32.totalorder %s24, 0
      %p72 = por %p70, %p71
      %s74 = sadd.s32 %s73, 1
      %p77 = scmp.eq.s32.totalorder %s18, 1
      %p78 = scmp.ne.s32.totalorder %s73, %s75
      %p79 = scmp.eq.s32.totalorder %s18, 0
      %p80 = por %p78, %p79
      %p81 = scmp.ne.s32.totalorder %s73, %s75
      %p82 = scmp.eq.s32.totalorder %s23, 1
      %p83 = por %p81, %p82
      %p84 = scmp.ne.s32.totalorder %s75, %s76
      %p85 = scmp.eq.s32.totalorder %s23, 0
      %p86 = por %p84, %p85
      %p87 = scmp.ne.s32.totalorder %s75, %s76
      %p88 = scmp.eq.s32.totalorder %s24, 1
      %p89 = por %p87, %p88
      %p91 = scmp.ne.s32.totalorder %s76, %s90
      %p92 = scmp.eq.s32.totalorder %s24, 0
      %p93 = por %p91, %p92
      %s95 = sadd.s32 %s94, 1
      %p98 = scmp.eq.s32.totalorder %s18, 1
      %p99 = scmp.ne.s32.totalorder %s94, %s96
      %p100 = scmp.eq.s32.totalorder %s18, 0
      %p101 = por %p99, %p100
      %p102 = scmp.ne.s32.totalorder %s94, %s96
      %p103 = scmp.eq.s32.totalorder %s23, 1
      %p104 = por %p102, %p103
      %p105 = scmp.ne.s32.totalorder %s96, %s97
      %p106 = scmp.eq.s32.totalorder %s23, 0
      %p107 = por %p105, %p106
      %p108 = scmp.ne.s32.totalorder %s96, %s97
      %p109 = scmp.eq.s32.totalorder %s24, 1
      %p110 = por %p108, %p109
      %p112 = scmp.ne.s32.totalorder %s97, %s111
      %p113 = scmp.eq.s32.totalorder %s24, 0
      %p114 = por %p112, %p113
      %s116 = sadd.s32 %s115, 1
      %p119 = scmp.eq.s32.totalorder %s18, 1
      %p120 = scmp.ne.s32.totalorder %s115, %s117
      %p121 = scmp.eq.s32.totalorder %s18, 0
      %p122 = por %p120, %p121
      %p123 = scmp.ne.s32.totalorder %s115, %s117
      %p124 = scmp.eq.s32.totalorder %s23, 1
      %p125 = por %p123, %p124
      %p126 = scmp.ne.s32.totalorder %s117, %s118
      %p127 = scmp.eq.s32.totalorder %s23, 0
      %p128 = por %p126, %p127
      %p129 = scmp.ne.s32.totalorder %s117, %s118
      %p130 = scmp.eq.s32.totalorder %s24, 1
      %p131 = por %p129, %p130
      %p133 = scmp.ne.s32.totalorder %s118, %s132
      %p134 = scmp.eq.s32.totalorder %s24, 0
      %p135 = por %p133, %p134
      %s137 = sadd.s32 %s136, 1
      %p140 = scmp.eq.s32.totalorder %s18, 1
      %p141 = scmp.ne.s32.totalorder %s136, %s138
      %p142 = scmp.eq.s32.totalorder %s18, 0
      %p143 = por %p141, %p142
      %p144 = scmp.ne.s32.totalorder %s136, %s138
      %p145 = scmp.eq.s32.totalorder %s23, 1
      %p146 = por %p144, %p145
      %p147 = scmp.ne.s32.totalorder %s138, %s139
      %p148 = scmp.eq.s32.totalorder %s23, 0
      %p149 = por %p147, %p148
      %p150 = scmp.ne.s32.totalorder %s138, %s139
      %p151 = scmp.eq.s32.totalorder %s24, 1
      %p152 = por %p150, %p151
      %p154 = scmp.ne.s32.totalorder %s139, %s153
      %p155 = scmp.eq.s32.totalorder %s24, 0
      %p156 = por %p154, %p155
      %s158 = sadd.s32 %s157, 1
      %p161 = scmp.eq.s32.totalorder %s18, 1
      %p162 = scmp.ne.s32.totalorder %s157, %s159
      %p163 = scmp.eq.s32.totalorder %s18, 0
      %p164 = por %p162, %p163
      %p165 = scmp.ne.s32.totalorder %s157, %s159
      %p166 = scmp.eq.s32.totalorder %s23, 1
      %p167 = por %p165, %p166
      %p168 = scmp.ne.s32.totalorder %s159, %s160
      %p169 = scmp.eq.s32.totalorder %s23, 0
      %p170 = por %p168, %p169
      %p171 = scmp.ne.s32.totalorder %s159, %s160
      %p172 = scmp.eq.s32.totalorder %s24, 1
      %p173 = por %p171, %p172
      %p175 = scmp.ne.s32.totalorder %s160, %s174
      %p176 = scmp.eq.s32.totalorder %s24, 0
      %p177 = por %p175, %p176
      %s178 = ssub.s32 %s18, %s25
      %p179 = scmp.eq.s32.totalorder %s178, 0
      %s181 = sadd.s32 %s180, 1
      %s182 = scalar_select %p179, %s180, %s181
      %p185 = pneg %p179
      %p186 = scmp.eq.s32.totalorder %s18, 1
      %p187 = por %p185, %p186
      %p188 = scmp.ne.s32.totalorder %s180, %s183
      %p189 = scmp.eq.s32.totalorder %s18, 0
      %p190 = por %p188, %p189
      %p191 = scmp.ne.s32.totalorder %s180, %s183
      %p192 = scmp.eq.s32.totalorder %s23, 1
      %p193 = por %p191, %p192
      %p194 = scmp.ne.s32.totalorder %s183, %s184
      %p195 = scmp.eq.s32.totalorder %s23, 0
      %p196 = por %p194, %p195
      %p197 = scmp.ne.s32.totalorder %s183, %s184
      %p198 = scmp.eq.s32.totalorder %s24, 1
      %p199 = por %p197, %p198
      %p201 = scmp.ne.s32.totalorder %s184, %s200
      %p202 = scmp.eq.s32.totalorder %s24, 0
      %p203 = por %p201, %p202
      %p204 = scmp.le.s32.totalorder 1, %s18
      %p205 = scmp.lt.s32.totalorder %s18, 3
      %p206 = pnand %p204, %p205
      %p207 = pneg %p206
      // Predicated region
      $region9: #{tpu_custom_call.1} parent=5 // pred_check
        _
      $region10: #{tpu_custom_call.1} parent=5 // pred_check_branch
        %209 = sbr.rel (%p206) target = $region12
      $region11: #{tpu_custom_call.1} parent=5 // pred_region
        %s210 = ssub.s32 %s18, 1
        // Predicated region
        $region13: #{tpu_custom_call.1} parent=11 // pred_check
          %p211 = pneg %p65
        $region14: #{tpu_custom_call.1} parent=11 // pred_check_branch
          %213 = sbr.rel (%p211) target = $region16
        $region15: #{tpu_custom_call.1} parent=11 // pred_region
          _
        $region16: #{tpu_custom_call.1} parent=11 // pred_fallthru
          _
        // Predicated region
        $region17: #{tpu_custom_call.1} parent=11 // pred_check
          %p214 = pneg %p86
        $region18: #{tpu_custom_call.1} parent=11 // pred_check_branch
          %216 = sbr.rel (%p214) target = $region20
        $region19: #{tpu_custom_call.1} parent=11 // pred_region
          _
        $region20: #{tpu_custom_call.1} parent=11 // pred_fallthru
          _
        // Predicated region
        $region21: #{tpu_custom_call.1} parent=11 // pred_check
          %p217 = pneg %p107
        $region22: #{tpu_custom_call.1} parent=11 // pred_check_branch
          %219 = sbr.rel (%p217) target = $region24
        $region23: #{tpu_custom_call.1} parent=11 // pred_region
          _
        $region24: #{tpu_custom_call.1} parent=11 // pred_fallthru
          _
        // Predicated region
        $region25: #{tpu_custom_call.1} parent=11 // pred_check
          %p220 = pneg %p128
        $region26: #{tpu_custom_call.1} parent=11 // pred_check_branch
          %222 = sbr.rel (%p220) target = $region28
        $region27: #{tpu_custom_call.1} parent=11 // pred_region
          _
        $region28: #{tpu_custom_call.1} parent=11 // pred_fallthru
          _
        // Predicated region
        $region29: #{tpu_custom_call.1} parent=11 // pred_check
          %p223 = pneg %p149
        $region30: #{tpu_custom_call.1} parent=11 // pred_check_branch
          %225 = sbr.rel (%p223) target = $region32
        $region31: #{tpu_custom_call.1} parent=11 // pred_region
          _
        $region32: #{tpu_custom_call.1} parent=11 // pred_fallthru
          _
        // Predicated region
        $region33: #{tpu_custom_call.1} parent=11 // pred_check
          %p226 = pneg %p170
        $region34: #{tpu_custom_call.1} parent=11 // pred_check_branch
          %228 = sbr.rel (%p226) target = $region36
        $region35: #{tpu_custom_call.1} parent=11 // pred_region
          _
        $region36: #{tpu_custom_call.1} parent=11 // pred_fallthru
          _
      $region12: #{tpu_custom_call.1} parent=5 // pred_fallthru
        _
      %p229 = scmp.lt.s32.totalorder %s18, 2
      // Predicated region
      $region37: #{tpu_custom_call.1} parent=5 // pred_check
        %p230 = pneg %p229
      $region38: #{tpu_custom_call.1} parent=5 // pred_check_branch
        %232 = sbr.rel (%p230) target = $region40
      $region39: #{tpu_custom_call.1} parent=5 // pred_region
        // Predicated region
        $region41: #{tpu_custom_call.1} parent=39 // pred_check
          %p233 = pneg %p38
        $region42: #{tpu_custom_call.1} parent=39 // pred_check_branch
          %235 = sbr.rel (%p233) target = $region44
        $region43: #{tpu_custom_call.1} parent=39 // pred_region
          %p236 = scmp.lt.s32.totalorder %s18, 1
          %s237 = scalar_select %p236, %s18, 1
          %s238 = smul.addr %s237, 16
          %s239 = smul.addr %s238, 8
          %s240 = scalar_lea.vmem %s0, %s239
        $region44: #{tpu_custom_call.1} parent=39 // pred_fallthru
          _
      $region40: #{tpu_custom_call.1} parent=5 // pred_fallthru
        _
      %p241 = scmp.le.s32.totalorder 1, %s18
      %p242 = scmp.lt.s32.totalorder %s18, 3
      %p243 = pnand %p241, %p242
      %p244 = pneg %p243
      // Predicated region
      $region45: #{tpu_custom_call.1} parent=5 // pred_check
        _
      $region46: #{tpu_custom_call.1} parent=5 // pred_check_branch
        %246 = sbr.rel (%p243) target = $region48
      $region47: #{tpu_custom_call.1} parent=5 // pred_region
        %s247 = ssub.s32 %s18, 1
        %p248 = scmp.lt.s32.totalorder %s23, 1
        %s249 = scalar_select %p248, %s23, 1
        %s250 = smul.addr %s249, 16
        %s251 = smul.addr %s250, 8
        %s252 = scalar_lea.vmem %s0, %s251
        %p253 = pneg %p44
        %p254 = pneg %p41
        %p255 = pneg %p65
        %p256 = pneg %p62
        %p257 = pneg %p86
        %p258 = pneg %p83
        %p259 = pneg %p107
        %p260 = pneg %p104
        %p261 = pneg %p128
        %p262 = pneg %p125
        %p263 = pneg %p149
        %p264 = pneg %p146
        %p265 = pneg %p170
        %p266 = pneg %p167
        %p267 = pneg %p196
        %p268 = pneg %p193
        %s269 = sand.u32 %s183, 1
        %s270 = scalar_lea.sflag [#allocation4], %s269
        %s271 = sand.u32 %s183, 1
        %s272 = scalar_lea.vmem [#allocation3], %s271
        %p273 = scmp.lt.s32.totalorder %s23, 1
        %s274 = scalar_select %p273, %s23, 1
        %s275 = smul.addr %s274, 16
        %s276 = smul.addr %s275, 8
        %s277 = scalar_lea.vmem %s0, %s276
        %v278 = vld [vmem:[%s277] sm:$0xff]
        %v279 = vld [vmem:[%s277 + $0x8] sm:$0xff]
        %v280 = vld [vmem:[%s277 + $0x10] sm:$0xff]
        %v281 = vld [vmem:[%s277 + $0x18] sm:$0xff]
        %v282 = vld [vmem:[%s277 + $0x20] sm:$0xff]
        %v283 = vld [vmem:[%s277 + $0x28] sm:$0xff]
        %v284 = vld [vmem:[%s277 + $0x30] sm:$0xff]
        %v285 = vld [vmem:[%s277 + $0x38] sm:$0xff]
        %v286 = vld [vmem:[%s277 + $0x40] sm:$0xff]
        %v287 = vld [vmem:[%s277 + $0x48] sm:$0xff]
        %v288 = vld [vmem:[%s277 + $0x50] sm:$0xff]
        %v289 = vld [vmem:[%s277 + $0x58] sm:$0xff]
        %v290 = vld [vmem:[%s277 + $0x60] sm:$0xff]
        %v291 = vld [vmem:[%s277 + $0x68] sm:$0xff]
        %v292 = vld [vmem:[%s277 + $0x70] sm:$0xff]
        %v293 = vld [vmem:[%s277 + $0x78] sm:$0xff]
        %294 = vxpose.xlu0.b32.start [1/16] %v278, 128
        %295 = vxpose.xlu0.b32.cont [2/16] %v279, 128
        %296 = vxpose.xlu0.b32.cont [3/16] %v280, 128
        %297 = vxpose.xlu0.b32.cont [4/16] %v281, 128
        %298 = vxpose.xlu0.b32.cont [5/16] %v282, 128
        %299 = vxpose.xlu0.b32.cont [6/16] %v283, 128
        %300 = vxpose.xlu0.b32.cont [7/16] %v284, 128
        %301 = vxpose.xlu0.b32.cont [8/16] %v285, 128
        %302 = vxpose.xlu0.b32.cont [9/16] %v286, 128
        %303 = vxpose.xlu0.b32.cont [10/16] %v287, 128
        %304 = vxpose.xlu0.b32.cont [11/16] %v288, 128
        %305 = vxpose.xlu0.b32.cont [12/16] %v289, 128
        %306 = vxpose.xlu0.b32.cont [13/16] %v290, 128
        %307 = vxpose.xlu0.b32.cont [14/16] %v291, 128
        %308 = vxpose.xlu0.b32.cont [15/16] %v292, 128
        %309 = vxpose.xlu0.b32.end [16/16] %v293, 128
        %v310 = vpop.trf.xlu0
        %v311 = vpop.trf.xlu0
        %v312 = vpop.trf.xlu0
        %v313 = vpop.trf.xlu0
        %v314 = vpop.trf.xlu0
        %v315 = vpop.trf.xlu0
        %v316 = vpop.trf.xlu0
        %v317 = vpop.trf.xlu0
        %v318 = vpop.trf.xlu0
        %v319 = vpop.trf.xlu0
        %v320 = vpop.trf.xlu0
        %v321 = vpop.trf.xlu0
        %v322 = vpop.trf.xlu0
        %v323 = vpop.trf.xlu0
        %v324 = vpop.trf.xlu0
        %v325 = vpop.trf.xlu0
        %v326 = vld [vmem:[%s1] sm:$0xff]
        %v327 = vld [vmem:[%s1 + $0x8] sm:$0xff]
        %v328 = vld [vmem:[%s1 + $0x10] sm:$0xff]
        %v329 = vld [vmem:[%s1 + $0x18] sm:$0xff]
        %v330 = vld [vmem:[%s1 + $0x20] sm:$0xff]
        %v331 = vld [vmem:[%s1 + $0x28] sm:$0xff]
        %333 = vrot.lane.b32.xlu0 %v310, 127
        %v334 = vpop.permute.xlu0 %333
        %vm336 = vcmask 1039360
        %v337 = vsel %vm336, %v334, 0.0
        %338 = vrot.lane.b32.xlu0 %v310, 126
        %v339 = vpop.permute.xlu0 %338
        %vm341 = vcmask 1031168
        %v342 = vsel %vm341, %v339, 0.0
        %v343 = vld [vmem:[%s2] sm:$0xff]
        %v344 = vld [vmem:[%s2 + $0x8] sm:$0xff]
        %v345 = vld [vmem:[%s2 + $0x10] sm:$0xff]
        %v346 = vld [vmem:[%s2 + $0x18] sm:$0xff]
        %v347 = vld [vmem:[%s2 + $0x20] sm:$0xff]
        %v348 = vld [vmem:[%s2 + $0x28] sm:$0xff]
        %350 = vset.pattern.permute.xlu0 0
        %351 = vperm.xlu0 %350, %v343
        %v352 = vpop.permute.xlu0 %351
        %355 = vset.pattern.permute.xlu0 0
        %356 = vperm.xlu0 %355, %v344
        %v357 = vpop.permute.xlu0 %356
        %360 = vset.pattern.permute.xlu0 0
        %361 = vperm.xlu0 %360, %v345
        %v362 = vpop.permute.xlu0 %361
        %365 = vset.pattern.permute.xlu0 0
        %366 = vperm.xlu0 %365, %v346
        %v367 = vpop.permute.xlu0 %366
        %370 = vset.pattern.permute.xlu0 0
        %371 = vperm.xlu0 %370, %v347
        %v372 = vpop.permute.xlu0 %371
        %375 = vset.pattern.permute.xlu0 0
        %376 = vperm.xlu0 %375, %v348
        %v377 = vpop.permute.xlu0 %376
        %vm379 = vcmask 195584
        %v381 = vsel %vm379, %v326, 0
        %v384 = vsel %vm379, %v327, 0
        %v387 = vsel %vm379, %v328, 0
        %v390 = vsel %vm379, %v329, 0
        %v393 = vsel %vm379, %v330, 0
        %v396 = vsel %vm379, %v331, 0
        %398 = vmatprep.subr.mxu0 0.0
        %399 = vmatpush1.msra.mxu0 %v310
        %400 = vmatprep.subr.mxu0 0.0
        %401 = vmatpush1.msra.mxu0 %v337
        %402 = vmatprep.subr.mxu0 0.0
        %403 = vmatpush1.msra.mxu0 %v342
        %404 = vmatprep.subr.mxu0 0.0
        %405 = vmatpush1.msra.mxu0 0.0
        %406 = vmatprep.subr.mxu0 0.0
        %407 = vmatpush1.msra.mxu0 0.0
        %408 = vmatprep.subr.mxu0 0.0
        %409 = vmatpush1.msra.mxu0 0.0
        %410 = vmatprep.subr.mxu0 0.0
        %411 = vmatpush1.msra.mxu0 0.0
        %412 = vmatprep.subr.mxu0 0.0
        %413 = vmatpush1.msra.mxu0 0.0
        %414 = vmatprep.subr.mxu0 0.0
        %415 = vmatpush1.msra.mxu0 0.0
        %416 = vmatprep.subr.mxu0 0.0
        %417 = vmatpush1.msra.mxu0 0.0
        %418 = vmatprep.subr.mxu0 0.0
        %419 = vmatpush1.msra.mxu0 0.0
        %420 = vmatprep.subr.mxu0 0.0
        %421 = vmatpush1.msra.mxu0 0.0
        %422 = vmatprep.subr.mxu0 0.0
        %423 = vmatpush1.msra.mxu0 0.0
        %424 = vmatprep.subr.mxu0 0.0
        %425 = vmatpush1.msra.mxu0 0.0
        %426 = vmatprep.subr.mxu0 0.0
        %427 = vmatpush1.msra.mxu0 0.0
        %428 = vmatprep.subr.mxu0 0.0
        %429 = vmatpush1.msra.mxu0 0.0
        %430 = vmatprep.subr.mxu0 0.0
        %431 = vmatpush1.msra.mxu0 0.0
        %432 = vmatprep.subr.mxu0 0.0
        %433 = vmatpush1.msra.mxu0 0.0
        %434 = vmatprep.subr.mxu0 0.0
        %435 = vmatpush1.msra.mxu0 0.0
        %436 = vmatprep.subr.mxu0 0.0
        %437 = vmatpush1.msra.mxu0 0.0
        %438 = vmatprep.subr.mxu0 0.0
        %439 = vmatpush1.msra.mxu0 0.0
        %440 = vmatprep.subr.mxu0 0.0
        %441 = vmatpush1.msra.mxu0 0.0
        %442 = vmatprep.subr.mxu0 0.0
        %443 = vmatpush1.msra.mxu0 0.0
        %444 = vmatprep.subr.mxu0 0.0
        %445 = vmatpush1.msra.mxu0 0.0
        %446 = vmatprep.subr.mxu0 0.0
        %447 = vmatpush1.msra.mxu0 0.0
        %448 = vmatprep.subr.mxu0 0.0
        %449 = vmatpush1.msra.mxu0 0.0
        %450 = vmatprep.subr.mxu0 0.0
        %451 = vmatpush1.msra.mxu0 0.0
        %452 = vmatprep.subr.mxu0 0.0
        %453 = vmatpush1.msra.mxu0 0.0
        %454 = vmatprep.subr.mxu0 0.0
        %455 = vmatpush1.msra.mxu0 0.0
        %456 = vmatprep.subr.mxu0 0.0
        %457 = vmatpush1.msra.mxu0 0.0
        %458 = vmatprep.subr.mxu0 0.0
        %459 = vmatpush1.msra.mxu0 0.0
        %460 = vmatprep.subr.mxu0 0.0
        %461 = vmatpush1.msra.mxu0 0.0
        %462 = vmatprep.mubr.f32.mxu0 0.0
        %463 = vmatmul.mubr.f32.gmra.mrb[0].mxu0 %v381
        %v464 = vpop.f32.mrb[0].mxu0
        %v465 = vadd.f32 %v352, %v464
        %v466 = vpop.f32.mrb[0].mxu0
        %467 = vmatprep.mubr.f32.mxu0 0.0
        %468 = vmatmul.mubr.f32.gmra.mrb[0].mxu0 %v384
        %v469 = vpop.f32.mrb[0].mxu0
        %v470 = vadd.f32 %v357, %v469
        %v471 = vpop.f32.mrb[0].mxu0
        %472 = vmatprep.mubr.f32.mxu0 0.0
        %473 = vmatmul.mubr.f32.gmra.mrb[0].mxu0 %v387
        %v474 = vpop.f32.mrb[0].mxu0
        %v475 = vadd.f32 %v362, %v474
        %v476 = vpop.f32.mrb[0].mxu0
        %477 = vmatprep.mubr.f32.mxu0 0.0
        %478 = vmatmul.mubr.f32.gmra.mrb[0].mxu0 %v390
        %v479 = vpop.f32.mrb[0].mxu0
        %v480 = vadd.f32 %v367, %v479
        %v481 = vpop.f32.mrb[0].mxu0
        %482 = vmatprep.mubr.f32.mxu0 0.0
        %483 = vmatmul.mubr.f32.gmra.mrb[0].mxu0 %v393
        %v484 = vpop.f32.mrb[0].mxu0
        %v485 = vadd.f32 %v372, %v484
        %v486 = vpop.f32.mrb[0].mxu0
        %487 = vmatprep.mubr.f32.mxu0 0.0
        %488 = vmatmul.mubr.f32.gmra.mrb[0].mxu0 %v396
        %v489 = vpop.f32.mrb[0].mxu0
        %v490 = vadd.f32 %v377, %v489
        %v491 = vpop.f32.mrb[0].mxu0
        %492 = vdwg.mxu0
        %v493 = vmax.f32 %v465, 0.0
        %v494 = vmax.f32 %v470, 0.0
        %v495 = vmax.f32 %v475, 0.0
        %v496 = vmax.f32 %v480, 0.0
        %v497 = vmax.f32 %v485, 0.0
        %v498 = vmax.f32 %v490, 0.0
        %v499 = vld [vmem:[%s3] sm:$0xff]
        %v500 = vld [vmem:[%s3 + $0x8] sm:$0xff]
        %v501 = vld [vmem:[%s3 + $0x10] sm:$0xff]
        %v502 = vld [vmem:[%s3 + $0x18] sm:$0xff]
        %v503 = vld [vmem:[%s3 + $0x20] sm:$0xff]
        %v504 = vld [vmem:[%s3 + $0x28] sm:$0xff]
        %511 = vrot.lane.b32.xlu0 %v493, 127
        %v512 = vpop.permute.xlu0 %511
        %513 = vrot.lane.b32.xlu0 %v494, 127
        %v514 = vpop.permute.xlu0 %513
        %515 = vrot.lane.b32.xlu0 %v495, 127
        %v516 = vpop.permute.xlu0 %515
        %517 = vrot.lane.b32.xlu0 %v496, 127
        %v518 = vpop.permute.xlu0 %517
        %519 = vrot.lane.b32.xlu0 %v497, 127
        %v520 = vpop.permute.xlu0 %519
        %521 = vrot.lane.b32.xlu0 %v498, 127
        %v522 = vpop.permute.xlu0 %521
        %v529 = vsel %vm336, %v512, 0.0
        %v530 = vsel %vm336, %v514, 0.0
        %v531 = vsel %vm336, %v516, 0.0
        %v532 = vsel %vm336, %v518, 0.0
        %v533 = vsel %vm336, %v520, 0.0
        %v534 = vsel %vm336, %v522, 0.0
        %535 = vrot.lane.b32.xlu0 %v493, 126
        %v536 = vpop.permute.xlu0 %535
        %537 = vrot.lane.b32.xlu0 %v494, 126
        %v538 = vpop.permute.xlu0 %537
        %539 = vrot.lane.b32.xlu0 %v495, 126
        %v540 = vpop.permute.xlu0 %539
        %541 = vrot.lane.b32.xlu0 %v496, 126
        %v542 = vpop.permute.xlu0 %541
        %543 = vrot.lane.b32.xlu0 %v497, 126
        %v544 = vpop.permute.xlu0 %543
        %545 = vrot.lane.b32.xlu0 %v498, 126
        %v546 = vpop.permute.xlu0 %545
        %v553 = vsel %vm341, %v536, 0.0
        %v554 = vsel %vm341, %v538, 0.0
        %v555 = vsel %vm341, %v540, 0.0
        %v556 = vsel %vm341, %v542, 0.0
        %v557 = vsel %vm341, %v544, 0.0
        %v558 = vsel %vm341, %v546, 0.0
        %v559 = vld [vmem:[%s4] sm:$0xff]
        %v560 = vld [vmem:[%s4 + $0x8] sm:$0xff]
        %v561 = vld [vmem:[%s4 + $0x10] sm:$0xff]
        %563 = vset.pattern.permute.xlu0 0
        %564 = vperm.xlu0 %563, %v559
        %v565 = vpop.permute.xlu0 %564
        %568 = vset.pattern.permute.xlu0 0
        %569 = vperm.xlu0 %568, %v560
        %v570 = vpop.permute.xlu0 %569
        %573 = vset.pattern.permute.xlu0 0
        %574 = vperm.xlu0 %573, %v561
        %v575 = vpop.permute.xlu0 %574
        %vm577 = vcmask 130048
        %v579 = vsel %vm577, %v500, 0
        %v582 = vsel %vm577, %v502, 0
        %v585 = vsel %vm577, %v504, 0
        %587 = vmatprep.subr.mxu0 0.0
        %588 = vmatpush1.msra.mxu0 %v493
        %589 = vmatprep.subr.mxu0 0.0
        %590 = vmatpush1.msra.mxu0 %v494
        %591 = vmatprep.subr.mxu0 0.0
        %592 = vmatpush1.msra.mxu0 %v495
        %593 = vmatprep.subr.mxu0 0.0
        %594 = vmatpush1.msra.mxu0 %v496
        %595 = vmatprep.subr.mxu0 0.0
        %596 = vmatpush1.msra.mxu0 %v497
        %597 = vmatprep.subr.mxu0 0.0
        %598 = vmatpush1.msra.mxu0 %v498
        %599 = vmatprep.subr.mxu0 0.0
        %600 = vmatpush1.msra.mxu0 %v529
        %601 = vmatprep.subr.mxu0 0.0
        %602 = vmatpush1.msra.mxu0 %v530
        %603 = vmatprep.subr.mxu0 0.0
        %604 = vmatpush1.msra.mxu0 %v531
        %605 = vmatprep.subr.mxu0 0.0
        %606 = vmatpush1.msra.mxu0 %v532
        %607 = vmatprep.subr.mxu0 0.0
        %608 = vmatpush1.msra.mxu0 %v533
        %609 = vmatprep.subr.mxu0 0.0
        %610 = vmatpush1.msra.mxu0 %v534
        %611 = vmatprep.subr.mxu0 0.0
        %612 = vmatpush1.msra.mxu0 %v553
        %613 = vmatprep.subr.mxu0 0.0
        %614 = vmatpush1.msra.mxu0 %v554
        %615 = vmatprep.subr.mxu0 0.0
        %616 = vmatpush1.msra.mxu0 %v555
        %617 = vmatprep.subr.mxu0 0.0
        %618 = vmatpush1.msra.mxu0 %v556
        %619 = vmatprep.subr.mxu0 0.0
        %620 = vmatpush1.msra.mxu0 %v557
        %621 = vmatprep.subr.mxu0 0.0
        %622 = vmatpush1.msra.mxu0 %v558
        %623 = vmatprep.subr.mxu0 0.0
        %624 = vmatpush1.msra.mxu0 0.0
        %625 = vmatprep.subr.mxu0 0.0
        %626 = vmatpush1.msra.mxu0 0.0
        %627 = vmatprep.subr.mxu0 0.0
        %628 = vmatpush1.msra.mxu0 0.0
        %629 = vmatprep.subr.mxu0 0.0
        %630 = vmatpush1.msra.mxu0 0.0
        %631 = vmatprep.subr.mxu0 0.0
        %632 = vmatpush1.msra.mxu0 0.0
        %633 = vmatprep.subr.mxu0 0.0
        %634 = vmatpush1.msra.mxu0 0.0
        %635 = vmatprep.subr.mxu0 0.0
        %636 = vmatpush1.msra.mxu0 0.0
        %637 = vmatprep.subr.mxu0 0.0
        %638 = vmatpush1.msra.mxu0 0.0
        %639 = vmatprep.subr.mxu0 0.0
        %640 = vmatpush1.msra.mxu0 0.0
        %641 = vmatprep.subr.mxu0 0.0
        %642 = vmatpush1.msra.mxu0 0.0
        %643 = vmatprep.subr.mxu0 0.0
        %644 = vmatpush1.msra.mxu0 0.0
        %645 = vmatprep.subr.mxu0 0.0
        %646 = vmatpush1.msra.mxu0 0.0
        %647 = vmatprep.subr.mxu0 0.0
        %648 = vmatpush1.msra.mxu0 0.0
        %649 = vmatprep.subr.mxu0 0.0
        %650 = vmatpush1.msra.mxu0 0.0
        %651 = vmatprep.mubr.f32.mxu0 %v579
        %652 = vmatmul.mubr.f32.gmra.mrb[0].mxu0 %v499
        %v653 = vpop.f32.mrb[0].mxu0
        %v654 = vadd.f32 %v565, %v653
        %v655 = vpop.f32.mrb[0].mxu0
        %656 = vmatprep.mubr.f32.mxu0 %v582
        %657 = vmatmul.mubr.f32.gmra.mrb[0].mxu0 %v501
        %v658 = vpop.f32.mrb[0].mxu0
        %v659 = vadd.f32 %v570, %v658
        %v660 = vpop.f32.mrb[0].mxu0
        %661 = vmatprep.mubr.f32.mxu0 %v585
        %662 = vmatmul.mubr.f32.gmra.mrb[0].mxu0 %v503
        %v663 = vpop.f32.mrb[0].mxu0
        %v664 = vadd.f32 %v575, %v663
        %v665 = vpop.f32.mrb[0].mxu0
        %666 = vdwg.mxu0
        %v667 = vmax.f32 %v654, 0.0
        %v668 = vmax.f32 %v659, 0.0
        %v669 = vmax.f32 %v664, 0.0
        %673 = vrot.lane.b32.xlu0 %v667, 127
        %v674 = vpop.permute.xlu0 %673
        %675 = vrot.lane.b32.xlu0 %v668, 127
        %v676 = vpop.permute.xlu0 %675
        %677 = vrot.lane.b32.xlu0 %v669, 127
        %v678 = vpop.permute.xlu0 %677
        %v682 = vsel %vm336, %v674, 0.0
        %v683 = vsel %vm336, %v676, 0.0
        %v684 = vsel %vm336, %v678, 0.0
        %685 = vrot.lane.b32.xlu0 %v667, 126
        %v686 = vpop.permute.xlu0 %685
        %687 = vrot.lane.b32.xlu0 %v668, 126
        %v688 = vpop.permute.xlu0 %687
        %689 = vrot.lane.b32.xlu0 %v669, 126
        %v690 = vpop.permute.xlu0 %689
        %v694 = vsel %vm341, %v686, 0.0
        %v695 = vsel %vm341, %v688, 0.0
        %v696 = vsel %vm341, %v690, 0.0
        %v697 = vld [vmem:[%s5] sm:$0xff]
        %v698 = vld [vmem:[%s5 + $0x8] sm:$0xff]
        %v699 = vld [vmem:[%s5 + $0x10] sm:$0xff]
        %v700 = vld [vmem:[%s5 + $0x18] sm:$0xff]
        %v701 = vld [vmem:[%s5 + $0x20] sm:$0xff]
        %v702 = vld [vmem:[%s5 + $0x28] sm:$0xff]
        %v703 = vld [vmem:[%s5 + $0x30] sm:$0xff]
        %v704 = vld [vmem:[%s5 + $0x38] sm:$0xff]
        %v705 = vld [vmem:[%s5 + $0x40] sm:$0xff]
        %707 = vset.pattern.permute.xlu0 0
        %708 = vperm.xlu0 %707, %v697
        %v709 = vpop.permute.xlu0 %708
        %712 = vset.pattern.permute.xlu0 0
        %713 = vperm.xlu0 %712, %v698
        %v714 = vpop.permute.xlu0 %713
        %717 = vset.pattern.permute.xlu0 0
        %718 = vperm.xlu0 %717, %v699
        %v719 = vpop.permute.xlu0 %718
        %722 = vset.pattern.permute.xlu0 0
        %723 = vperm.xlu0 %722, %v700
        %v724 = vpop.permute.xlu0 %723
        %727 = vset.pattern.permute.xlu0 0
        %728 = vperm.xlu0 %727, %v701
        %v729 = vpop.permute.xlu0 %728
        %732 = vset.pattern.permute.xlu0 0
        %733 = vperm.xlu0 %732, %v702
        %v734 = vpop.permute.xlu0 %733
        %737 = vset.pattern.permute.xlu0 0
        %738 = vperm.xlu0 %737, %v703
        %v739 = vpop.permute.xlu0 %738
        %742 = vset.pattern.permute.xlu0 0
        %743 = vperm.xlu0 %742, %v704
        %v744 = vpop.permute.xlu0 %743
        %747 = vset.pattern.permute.xlu0 0
        %748 = vperm.xlu0 %747, %v705
        %v749 = vpop.permute.xlu0 %748
        %v751 = vmul.f32 %v667, %v709
        %v752 = vmul.f32 %v668, %v714
        %v753 = vmul.f32 %v669, %v719
        %v754 = vmul.f32 %v682, %v724
        %v755 = vmul.f32 %v683, %v729
        %v756 = vmul.f32 %v684, %v734
        %v757 = vmul.f32 %v694, %v739
        %v758 = vmul.f32 %v695, %v744
        %v759 = vmul.f32 %v696, %v749
        %v760 = vadd.f32 %v751, %v752
        %v761 = vadd.f32 %v760, %v753
        %v762 = vadd.f32 %v761, %v754
        %v763 = vadd.f32 %v762, %v755
        %v764 = vadd.f32 %v763, %v756
        %v765 = vadd.f32 %v764, %v757
        %v766 = vadd.f32 %v765, %v758
        %v767 = vadd.f32 %v766, %v759
        %v768 = vrot.slane %v767, 4
        %v769 = vadd.f32 %v767, %v768
        %v770 = vrot.slane %v769, 2
        %v771 = vadd.f32 %v769, %v770
        %v772 = vrot.slane %v771, 1
        %v773 = vadd.f32 %v771, %v772
        %v774 = vld [vmem:[#allocation2] sm:$0x1]
        %776 = vset.pattern.permute.xlu0 0
        %777 = vperm.xlu0 %776, %v774
        %v778 = vpop.permute.xlu0 %777
        %v780 = vlaneseq
        %v781 = vshrl.u32 %v780, 7
        %v782 = vsub.s32 0, %v781
        %v783 = vrot.slane %v778, %v782
        %v784 = vadd.f32 %v773, %v783
        %785 = vst [vmem:[%s272] sm:$0x1] %v784
        %s786 = sand.u32 %s183, 1
        %s787 = scalar_lea.sflag [#allocation4], %s786
        %s788 = sand.u32 %s183, 1
        %s789 = scalar_lea.vmem [#allocation3], %s788
        // Predicated region
        $region49: #{tpu_custom_call.1} parent=47 // pred_check
          %p790 = pneg %p193
        $region50: #{tpu_custom_call.1} parent=47 // pred_check_branch
          %792 = sbr.rel (%p790) target = $region52
        $region51: #{tpu_custom_call.1} parent=47 // pred_region
          %s794 = ssub.s32 16, 16
          %795 = vsyncadd %s787, %s794
          %s796 = smul.addr %s23, 16
          %s797 = scalar_lea.hbm %s7, %s796
          %s799 = sshll.u32 %s789, 4
          %s800 = int_to_ptr.vmem [resolvable:$true] %s799
          %802 = dma.vmem_to_hbm [thread:$0]  %s800, 16, %s797, %s787
        $region52: #{tpu_custom_call.1} parent=47 // pred_fallthru
          _
      $region48: #{tpu_custom_call.1} parent=5 // pred_fallthru
        _
      %p803 = scmp.le.s32.totalorder 2, %s18
      // Predicated region
      $region53: #{tpu_custom_call.1} parent=5 // pred_check
        %p804 = pneg %p803
      $region54: #{tpu_custom_call.1} parent=5 // pred_check_branch
        %806 = sbr.rel (%p804) target = $region56
      $region55: #{tpu_custom_call.1} parent=5 // pred_region
        %s807 = ssub.s32 %s18, 2
        // Predicated region
        $region57: #{tpu_custom_call.1} parent=55 // pred_check
          %p808 = pneg %p199
        $region58: #{tpu_custom_call.1} parent=55 // pred_check_branch
          %810 = sbr.rel (%p808) target = $region60
        $region59: #{tpu_custom_call.1} parent=55 // pred_region
          %s811 = sand.u32 %s184, 1
          %s812 = scalar_lea.sflag [#allocation4], %s811
          %s813 = sand.u32 %s184, 1
          %s814 = scalar_lea.vmem [#allocation3], %s813
          %815 = dma.done %s812, 16
        $region60: #{tpu_custom_call.1} parent=55 // pred_fallthru
          _
      $region56: #{tpu_custom_call.1} parent=5 // pred_fallthru
        _
    $region6: #{tpu_custom_call.1} parent=1 // loop_footer
      %s22 = sadd.s32 1, %s18
    $region7: #{tpu_custom_call.1} parent=1 // loop_footer_branch
      %17 = sbr.rel target = $region3
    $region8: #{tpu_custom_call.1} parent=1 // loop_exit
      _
    %816 = vsyncpa [#allocation4], 1
    %s817 = scalar_lea.sflag [#allocation4], 1
    %818 = vsyncpa %s817, 1

</llo_original>
